<compile_context>
chip_gen: v6e
topology: v6e:2x2x1
jax: 0.10.0
libtpu: 0.0.40
codegen_flags: <defaults>
</compile_context>

<pallas_src>
import jax
import jax.numpy as jnp
from jax.experimental import pallas as pl
from jax.experimental.pallas import tpu as pltpu


def _round_up(x, m):
    return (x + m - 1) // m * m


def mobilebert_self_output_kernel(x_ref, res_ref, w_ref, nw_ref, c_ref, o_ref):
    """out = (x @ w_fold) + res * nw + c   (f32 accumulate / elementwise)."""
    x = x_ref[...].astype(w_ref.dtype)          # in-kernel cast (VPU, hidden under DMA)
    acc = jnp.dot(x, w_ref[...], preferred_element_type=jnp.float32)   # MXU
    res = res_ref[...].astype(jnp.float32)
    out = acc + res * nw_ref[...] + c_ref[...]
    o_ref[...] = out.astype(o_ref.dtype)


def fold_params(dense_w, dense_b, nonorm_w, nonorm_b, matmul_dtype=jnp.bfloat16):
    """Fold dense bias + the two NoNorm applications into static constants.

    Call ONCE at model init and reuse the results for every forward call.
      out = x @ (W.T * nw^2) + res*nw + (b*nw^2 + nb*nw + nb)
    """
    nw = nonorm_w.astype(jnp.float32)
    nb = nonorm_b.astype(jnp.float32)
    b = dense_b.astype(jnp.float32)
    w_fold = (dense_w.astype(jnp.float32).T * (nw * nw)[None, :]).astype(matmul_dtype)
    c = (b * nw * nw + nb * nw + nb).reshape(1, -1)          # f32
    return w_fold, nw.reshape(1, -1), c


def mobilebert_self_output_folded(hidden_states, residual_tensor,
                                  w_fold, nw_row, c_row, *, tm=1024,
                                  out_dtype=None):
    """Fused forward. hidden_states / residual_tensor: (B, S, D), any float dtype."""
    B, S, D = hidden_states.shape
    M = B * S
    if out_dtype is None:
        out_dtype = hidden_states.dtype

    # Free reshapes: keep the last (lane) dim, no data movement, native dtype.
    x2 = hidden_states.reshape(M, D)
    r2 = residual_tensor.reshape(M, D)

    # Row tile: multiple of 16 (bf16 sublane packing); capped so the parallel
    # grid keeps >=4 steps when the problem allows (v7x: 2 TCs x >=2 steps),
    # and never larger than the (16-rounded) problem size.
    tm = max(16, min(tm, _round_up(pl.cdiv(M, 4), 16), _round_up(M, 16)))
    grid_m = pl.cdiv(M, tm)   # ragged last tile is fine: rows are independent

    out = pl.pallas_call(
        mobilebert_self_output_kernel,
        out_shape=jax.ShapeDtypeStruct((M, D), out_dtype),
        grid_spec=pltpu.PrefetchScalarGridSpec(
            num_scalar_prefetch=0,
            grid=(grid_m,),
            in_specs=[
                pl.BlockSpec((tm, D), lambda i: (i, 0)),   # x tile (native dtype)
                pl.BlockSpec((tm, D), lambda i: (i, 0)),   # residual tile (native dtype)
                pl.BlockSpec((D, D), lambda i: (0, 0)),    # folded weight, resident
                pl.BlockSpec((1, D), lambda i: (0, 0)),    # NoNorm weight (f32)
                pl.BlockSpec((1, D), lambda i: (0, 0)),    # folded bias constant (f32)
            ],
            out_specs=pl.BlockSpec((tm, D), lambda i: (i, 0)),
        ),
        compiler_params=pltpu.CompilerParams(
            dimension_semantics=("parallel",),
        ),
    )(x2, r2, w_fold, nw_row, c_row)

    return out.reshape(B, S, D)


def mobilebert_self_output(hidden_states, residual_tensor, dense_w, dense_b,
                           nonorm_w, nonorm_b, *, tm=1024,
                           matmul_dtype=jnp.bfloat16, out_dtype=None):
    """Convenience wrapper (folds params per call; prefer hoisting fold_params)."""
    w_fold, nw_row, c_row = fold_params(dense_w, dense_b, nonorm_w, nonorm_b,
                                        matmul_dtype=matmul_dtype)
    return mobilebert_self_output_folded(hidden_states, residual_tensor,
                                         w_fold, nw_row, c_row,
                                         tm=tm, out_dtype=out_dtype)


def reference(hidden_states, residual_tensor, dense_w, dense_b, nonorm_w, nonorm_b):
    """Pure-JAX f32 reference matching the PyTorch module line-for-line."""
    h = jnp.einsum("bsd,od->bso", hidden_states, dense_w) + dense_b
    h = h * nonorm_w + nonorm_b
    h = h + residual_tensor
    h = h * nonorm_w + nonorm_b
    return h


if __name__ == "__main__":
    # Module defaults: emb_dim=128, num_heads=1 -> intermediate_emb_dim = 128.
    B, S, D = 2, 8, 128

    key = jax.random.PRNGKey(0)
    k1, k2, k3, k4, k5, k6 = jax.random.split(key, 6)

    hidden_states = jax.random.normal(k1, (B, S, D), dtype=jnp.float32)
    residual = jax.random.normal(k2, (B, S, D), dtype=jnp.float32)

    bound = 1.0 / (D ** 0.5)
    dense_w = jax.random.uniform(k3, (D, D), minval=-bound, maxval=bound, dtype=jnp.float32)
    dense_b = jax.random.uniform(k4, (D,), minval=-bound, maxval=bound, dtype=jnp.float32)

    # NoNorm params are ones/zeros at init -- perturb deterministically so the
    # double-NoNorm path is exercised non-trivially.
    nonorm_w = jnp.ones((D,), jnp.float32) + 0.1 * jax.random.normal(k5, (D,), dtype=jnp.float32)
    nonorm_b = 0.1 * jax.random.normal(k6, (D,), dtype=jnp.float32)

    ref = reference(hidden_states, residual, dense_w, dense_b, nonorm_w, nonorm_b)

    # 1) Exact-semantics check: f32 matmul path, tight tolerance.
    w32, nw32, c32 = fold_params(dense_w, dense_b, nonorm_w, nonorm_b,
                                 matmul_dtype=jnp.float32)
    out_f32 = mobilebert_self_output_folded(hidden_states, residual, w32, nw32, c32)
    out_f32 = jax.block_until_ready(out_f32)
    assert out_f32.shape == (B, S, D) and out_f32.dtype == jnp.float32
    assert jnp.allclose(out_f32, ref, atol=1e-4, rtol=1e-4), "f32 path mismatch vs reference"

    # 2) Production path: fold ONCE (hoisted), bf16 MXU inputs, f32 accumulate,
    #    native-dtype (f32) output.
    w_fold, nw_row, c_row = fold_params(dense_w, dense_b, nonorm_w, nonorm_b)
    out = mobilebert_self_output_folded(hidden_states, residual, w_fold, nw_row, c_row)
    out = jax.block_until_ready(out)
    assert out.shape == (B, S, D)
    max_err = float(jnp.max(jnp.abs(out - ref)))
    assert max_err < 5e-2, f"bf16 path error too large: {max_err}"

    # 3) Bandwidth-saver output path (bf16 store), reusing the same folded params.
    out_bf16 = mobilebert_self_output_folded(hidden_states, residual,
                                             w_fold, nw_row, c_row,
                                             out_dtype=jnp.bfloat16)
    out_bf16 = jax.block_until_ready(out_bf16)
    assert out_bf16.shape == (B, S, D) and out_bf16.dtype == jnp.bfloat16
    max_err_bf16 = float(jnp.max(jnp.abs(out_bf16.astype(jnp.float32) - ref)))
    assert max_err_bf16 < 1e-1, f"bf16-out path error too large: {max_err_bf16}"

    print("KERNEL_OK")
</pallas_src>

<mosaic_0001>
module attributes {stable_mosaic.version = 11 : i64} {
  func.func @mobilebert_self_output_kernel(%arg0: i32, %arg1: memref<16x128xf32, #tpu.memory_space<vmem>>, %arg2: memref<16x128xf32, #tpu.memory_space<vmem>>, %arg3: memref<128x128xf32, #tpu.memory_space<vmem>>, %arg4: memref<1x128xf32, #tpu.memory_space<vmem>>, %arg5: memref<1x128xf32, #tpu.memory_space<vmem>>, %arg6: memref<16x128xf32, #tpu.memory_space<vmem>>) attributes {dimension_semantics = [#tpu.dimension_semantics<parallel>], iteration_bounds = array<i64: 1>, scalar_prefetch = 0 : i64, scratch_operands = 0 : i64, tpu.core_type = #tpu.core_type<tc>, window_params = [{transform_indices = @transform_0, window_bounds = array<i64: 16, 128>}, {transform_indices = @transform_1, window_bounds = array<i64: 16, 128>}, {pipeline_mode = #tpu.pipeline_mode<synchronous>, transform_indices = @transform_2, window_bounds = array<i64: 128, 128>}, {pipeline_mode = #tpu.pipeline_mode<synchronous>, transform_indices = @transform_3, window_bounds = array<i64: 1, 128>}, {pipeline_mode = #tpu.pipeline_mode<synchronous>, transform_indices = @transform_4, window_bounds = array<i64: 1, 128>}, {transform_indices = @transform_5, window_bounds = array<i64: 16, 128>}]} {
    %c0 = arith.constant 0 : index
    %c0_0 = arith.constant 0 : index
    %0 = vector.load %arg1[%c0, %c0_0] : memref<16x128xf32, #tpu.memory_space<vmem>>, vector<16x128xf32>
    %c0_1 = arith.constant 0 : index
    %c0_2 = arith.constant 0 : index
    %1 = vector.load %arg3[%c0_1, %c0_2] : memref<128x128xf32, #tpu.memory_space<vmem>>, vector<128x128xf32>
    %cst = arith.constant dense<0.000000e+00> : vector<16x128xf32>
    %2 = tpu.matmul %0, %1, %cst {dimension_numbers = #tpu.dot_dimension_numbers<[1], [0], [0], [1], [0, 0, 1, 1], [], []>} : vector<16x128xf32>, vector<128x128xf32>, vector<16x128xf32> -> vector<16x128xf32>
    %c0_3 = arith.constant 0 : index
    %c0_4 = arith.constant 0 : index
    %3 = vector.load %arg2[%c0_3, %c0_4] : memref<16x128xf32, #tpu.memory_space<vmem>>, vector<16x128xf32>
    %c0_5 = arith.constant 0 : index
    %c0_6 = arith.constant 0 : index
    %4 = vector.load %arg4[%c0_5, %c0_6] : memref<1x128xf32, #tpu.memory_space<vmem>>, vector<1x128xf32>
    %5 = vector.broadcast %4 : vector<1x128xf32> to vector<16x128xf32>
    %6 = arith.mulf %3, %5 : vector<16x128xf32>
    %7 = arith.addf %2, %6 : vector<16x128xf32>
    %c0_7 = arith.constant 0 : index
    %c0_8 = arith.constant 0 : index
    %8 = vector.load %arg5[%c0_7, %c0_8] : memref<1x128xf32, #tpu.memory_space<vmem>>, vector<1x128xf32>
    %9 = vector.broadcast %8 : vector<1x128xf32> to vector<16x128xf32>
    %10 = arith.addf %7, %9 : vector<16x128xf32>
    %c0_9 = arith.constant 0 : index
    %c0_10 = arith.constant 0 : index
    %11 = vector.load %arg6[%c0_9, %c0_10] : memref<16x128xf32, #tpu.memory_space<vmem>>, vector<16x128xf32>
    tpu.vector_store %arg6[%c0_9, %c0_10], %10 {strides = array<i32>} : memref<16x128xf32, #tpu.memory_space<vmem>>, vector<16x128xf32>,
    return
  }
  func.func @transform_0(%arg0: i32) -> (i32, i32) {
    %c0_i32 = arith.constant 0 : i32
    %c0_i32_0 = arith.constant 0 : i32
    return %arg0, %c0_i32 : i32, i32
  }
  func.func @transform_1(%arg0: i32) -> (i32, i32) {
    %c0_i32 = arith.constant 0 : i32
    %c0_i32_0 = arith.constant 0 : i32
    return %arg0, %c0_i32 : i32, i32
  }
  func.func @transform_2(%arg0: i32) -> (i32, i32) {
    %c0_i32 = arith.constant 0 : i32
    %c0_i32_0 = arith.constant 0 : i32
    %c0_i32_1 = arith.constant 0 : i32
    return %c0_i32, %c0_i32_0 : i32, i32
  }
  func.func @transform_3(%arg0: i32) -> (i32, i32) {
    %c0_i32 = arith.constant 0 : i32
    %c0_i32_0 = arith.constant 0 : i32
    %c0_i32_1 = arith.constant 0 : i32
    return %c0_i32, %c0_i32_0 : i32, i32
  }
  func.func @transform_4(%arg0: i32) -> (i32, i32) {
    %c0_i32 = arith.constant 0 : i32
    %c0_i32_0 = arith.constant 0 : i32
    %c0_i32_1 = arith.constant 0 : i32
    return %c0_i32, %c0_i32_0 : i32, i32
  }
  func.func @transform_5(%arg0: i32) -> (i32, i32) {
    %c0_i32 = arith.constant 0 : i32
    %c0_i32_0 = arith.constant 0 : i32
    return %arg0, %c0_i32 : i32, i32
  }
}

</mosaic_0001>

<llo_original>
// kernel: tpu_custom_call.1
$region0: #{tpu_custom_call.1}
  #allocation0 [shape = 'u32[]', space=smem, size = 0x4, offset = 0x4, fixed_abs, tag = 'smem constant byte address 0x4 - core index']
  #allocation1 [shape = 'u32[144,128]{1,0:T(1,128)}', space=vmem, size = 0x12000, scoped, tag = 'internal scratch']
  %s0 = inlined_call_operand.hbm [shape: f32[16,128], index: 0, kind: input, shape index: {}]
  %s1 = inlined_call_operand.hbm [shape: f32[16,128], index: 1, kind: input, shape index: {}]
  %s2 = inlined_call_operand.hbm [shape: f32[128,128], index: 2, kind: input, shape index: {}]
  %s3 = inlined_call_operand.vmem [shape: f32[1,128], index: 3, kind: input, shape index: {}]
  %s4 = inlined_call_operand.vmem [shape: f32[1,128], index: 4, kind: input, shape index: {}]
  %s5 = inlined_call_operand.hbm [shape: f32[16,128], index: 5, kind: output, shape index: {}]
  %s6 = sld [smem:[#allocation0]]
  $region42: #{tpu_custom_call.1} parent=0
    _
  %s8 = ssub.s32 1, %s6
  %s9 = scalar_select 0, %s8, %s6
  $region1: #{tpu_custom_call.1} parent=0
    #allocation2 [shape = 'u8[8192]{0}', space=vmem, size = 0x2000, scoped, tag = 'input window, operand 0, single buffered']
    #allocation3 [shape = 's32[1]{0}', space=sflag, size = 0x4, scoped, tag = 'scoped memory for tpu_custom_call.1']
    #allocation4 [shape = 's32[1]{0}', space=sflag, size = 0x4, scoped, tag = 'scoped memory for tpu_custom_call.1']
    #allocation5 [shape = 'u8[8192]{0}', space=vmem, size = 0x2000, scoped, tag = 'input window, operand 1, single buffered']
    #allocation6 [shape = 's32[1]{0}', space=sflag, size = 0x4, scoped, tag = 'scoped memory for tpu_custom_call.1']
    #allocation7 [shape = 'u8[65536]{0}', space=vmem, size = 0x10000, scoped, tag = 'input window, operand 2, single buffered']
    #allocation8 [shape = 'u8[8192]{0}', space=vmem, size = 0x2000, scoped, tag = 'output window, operand 0, single buffered']
    %10 = vsyncpa [#allocation3], 0
    %11 = vsyncpa [#allocation6], 0
    %12 = vsyncpa [#allocation4], 0
    // Predicated region
    $region2: #{tpu_custom_call.1} parent=1 // pred_check
      _
    $region3: #{tpu_custom_call.1} parent=1 // pred_check_branch
      %14 = sbr.rel (0) target = $region5
    $region4: #{tpu_custom_call.1} parent=1 // pred_region
      %s16 = ssub.s32 256, 256
      %17 = vsyncadd [#allocation3], %s16
      %s18 = sshll.u32 [#allocation2], 4
      %s19 = int_to_ptr.vmem [resolvable:$true] %s18
      %24 = dma.hbm_to_vmem [thread:$0]  %s0, 256, %s19, [#allocation3], 128, 128, 8
    $region5: #{tpu_custom_call.1} parent=1 // pred_fallthru
      _
    // Predicated region
    $region6: #{tpu_custom_call.1} parent=1 // pred_check
      _
    $region7: #{tpu_custom_call.1} parent=1 // pred_check_branch
      %26 = sbr.rel (0) target = $region9
    $region8: #{tpu_custom_call.1} parent=1 // pred_region
      %s28 = ssub.s32 256, 256
      %29 = vsyncadd [#allocation6], %s28
      %s30 = sshll.u32 [#allocation5], 4
      %s31 = int_to_ptr.vmem [resolvable:$true] %s30
      %36 = dma.hbm_to_vmem [thread:$0]  %s1, 256, %s31, [#allocation6], 128, 128, 8
    $region9: #{tpu_custom_call.1} parent=1 // pred_fallthru
      _
    // Predicated region
    $region10: #{tpu_custom_call.1} parent=1 // pred_check
      _
    $region11: #{tpu_custom_call.1} parent=1 // pred_check_branch
      %38 = sbr.rel (0) target = $region13
    $region12: #{tpu_custom_call.1} parent=1 // pred_region
      %s40 = ssub.s32 2048, 2048
      %41 = vsyncadd [#allocation6], %s40
      %s42 = sshll.u32 [#allocation7], 4
      %s43 = int_to_ptr.vmem [resolvable:$true] %s42
      %48 = dma.hbm_to_vmem [thread:$0]  %s2, 2048, %s43, [#allocation6], 128, 128, 8
    $region13: #{tpu_custom_call.1} parent=1 // pred_fallthru
      _
    // Predicated region
    $region14: #{tpu_custom_call.1} parent=1 // pred_check
      _
    $region15: #{tpu_custom_call.1} parent=1 // pred_check_branch
      %50 = sbr.rel (0) target = $region17
    $region16: #{tpu_custom_call.1} parent=1 // pred_region
      _
    $region17: #{tpu_custom_call.1} parent=1 // pred_fallthru
      _
    // Predicated region
    $region18: #{tpu_custom_call.1} parent=1 // pred_check
      _
    $region19: #{tpu_custom_call.1} parent=1 // pred_check_branch
      %52 = sbr.rel (0) target = $region21
    $region20: #{tpu_custom_call.1} parent=1 // pred_region
      _
    $region21: #{tpu_custom_call.1} parent=1 // pred_fallthru
      _
    // Predicated region
    $region22: #{tpu_custom_call.1} parent=1 // pred_check
      _
    $region23: #{tpu_custom_call.1} parent=1 // pred_check_branch
      %54 = sbr.rel (0) target = $region25
    $region24: #{tpu_custom_call.1} parent=1 // pred_region
      %55 = dma.done [#allocation3], 256
    $region25: #{tpu_custom_call.1} parent=1 // pred_fallthru
      _
    // Predicated region
    $region26: #{tpu_custom_call.1} parent=1 // pred_check
      _
    $region27: #{tpu_custom_call.1} parent=1 // pred_check_branch
      %57 = sbr.rel (0) target = $region29
    $region28: #{tpu_custom_call.1} parent=1 // pred_region
      %58 = dma.done [#allocation6], 256
    $region29: #{tpu_custom_call.1} parent=1 // pred_fallthru
      _
    // Predicated region
    $region30: #{tpu_custom_call.1} parent=1 // pred_check
      _
    $region31: #{tpu_custom_call.1} parent=1 // pred_check_branch
      %60 = sbr.rel (0) target = $region33
    $region32: #{tpu_custom_call.1} parent=1 // pred_region
      %61 = dma.done [#allocation6], 2048
    $region33: #{tpu_custom_call.1} parent=1 // pred_fallthru
      _
    %v62 = vld [vmem:[#allocation2] sm:$0xff]
    %v63 = vld [vmem:[#allocation2 + $0x8] sm:$0xff]
    %v64 = vld [vmem:[#allocation7] sm:$0xff]
    %v65 = vld [vmem:[#allocation7 + $0x8] sm:$0xff]
    %v66 = vld [vmem:[#allocation7 + $0x10] sm:$0xff]
    %v67 = vld [vmem:[#allocation7 + $0x18] sm:$0xff]
    %v68 = vld [vmem:[#allocation7 + $0x20] sm:$0xff]
    %v69 = vld [vmem:[#allocation7 + $0x28] sm:$0xff]
    %v70 = vld [vmem:[#allocation7 + $0x30] sm:$0xff]
    %v71 = vld [vmem:[#allocation7 + $0x38] sm:$0xff]
    %v72 = vld [vmem:[#allocation7 + $0x40] sm:$0xff]
    %v73 = vld [vmem:[#allocation7 + $0x48] sm:$0xff]
    %v74 = vld [vmem:[#allocation7 + $0x50] sm:$0xff]
    %v75 = vld [vmem:[#allocation7 + $0x58] sm:$0xff]
    %v76 = vld [vmem:[#allocation7 + $0x60] sm:$0xff]
    %v77 = vld [vmem:[#allocation7 + $0x68] sm:$0xff]
    %v78 = vld [vmem:[#allocation7 + $0x70] sm:$0xff]
    %v79 = vld [vmem:[#allocation7 + $0x78] sm:$0xff]
    %v80 = vld [vmem:[#allocation5] sm:$0xff]
    %v81 = vld [vmem:[#allocation5 + $0x8] sm:$0xff]
    %v82 = vld [vmem:[%s3] sm:$0x1]
    %v84 = vlaneseq
    %v85 = vshrl.u32 %v84, 7
    %v86 = vsub.s32 0, %v85
    %v87 = vrot.slane %v82, %v86
    %v89 = vmul.f32 %v80, %v87
    %v90 = vmul.f32 %v81, %v87
    %91 = vmatprep.subr.mxu0 0.0
    %92 = vmatpush1.msra.mxu0 %v79
    %93 = vmatprep.subr.mxu0 0.0
    %94 = vmatpush1.msra.mxu0 %v78
    %95 = vmatprep.subr.mxu0 0.0
    %96 = vmatpush1.msra.mxu0 %v77
    %97 = vmatprep.subr.mxu0 0.0
    %98 = vmatpush1.msra.mxu0 %v76
    %99 = vmatprep.subr.mxu0 0.0
    %100 = vmatpush1.msra.mxu0 %v75
    %101 = vmatprep.subr.mxu0 0.0
    %102 = vmatpush1.msra.mxu0 %v74
    %103 = vmatprep.subr.mxu0 0.0
    %104 = vmatpush1.msra.mxu0 %v73
    %105 = vmatprep.subr.mxu0 0.0
    %106 = vmatpush1.msra.mxu0 %v72
    %107 = vmatprep.subr.mxu0 0.0
    %108 = vmatpush1.msra.mxu0 %v71
    %109 = vmatprep.subr.mxu0 0.0
    %110 = vmatpush1.msra.mxu0 %v70
    %111 = vmatprep.subr.mxu0 0.0
    %112 = vmatpush1.msra.mxu0 %v69
    %113 = vmatprep.subr.mxu0 0.0
    %114 = vmatpush1.msra.mxu0 %v68
    %115 = vmatprep.subr.mxu0 0.0
    %116 = vmatpush1.msra.mxu0 %v67
    %117 = vmatprep.subr.mxu0 0.0
    %118 = vmatpush1.msra.mxu0 %v66
    %119 = vmatprep.subr.mxu0 0.0
    %120 = vmatpush1.msra.mxu0 %v65
    %121 = vmatprep.subr.mxu0 0.0
    %122 = vmatpush1.msra.mxu0 %v64
    %123 = vmatprep.subr.mxu0 0.0
    %124 = vmatpush2.msra.mxu0 0.0
    %125 = vmatprep.subr.mxu0 0.0
    %126 = vmatpush2.msra.mxu0 0.0
    %127 = vmatprep.subr.mxu0 0.0
    %128 = vmatpush2.msra.mxu0 0.0
    %129 = vmatprep.subr.mxu0 0.0
    %130 = vmatpush2.msra.mxu0 0.0
    %131 = vmatprep.subr.mxu0 0.0
    %132 = vmatpush2.msra.mxu0 0.0
    %133 = vmatprep.subr.mxu0 0.0
    %134 = vmatpush2.msra.mxu0 0.0
    %135 = vmatprep.subr.mxu0 0.0
    %136 = vmatpush2.msra.mxu0 0.0
    %137 = vmatprep.subr.mxu0 0.0
    %138 = vmatpush2.msra.mxu0 0.0
    %139 = vmatprep.subr.mxu0 0.0
    %140 = vmatpush2.msra.mxu0 0.0
    %141 = vmatprep.subr.mxu0 0.0
    %142 = vmatpush2.msra.mxu0 0.0
    %143 = vmatprep.subr.mxu0 0.0
    %144 = vmatpush2.msra.mxu0 0.0
    %145 = vmatprep.subr.mxu0 0.0
    %146 = vmatpush2.msra.mxu0 0.0
    %147 = vmatprep.subr.mxu0 0.0
    %148 = vmatpush2.msra.mxu0 0.0
    %149 = vmatprep.subr.mxu0 0.0
    %150 = vmatpush2.msra.mxu0 0.0
    %151 = vmatprep.subr.mxu0 0.0
    %152 = vmatpush2.msra.mxu0 0.0
    %153 = vmatprep.subr.mxu0 0.0
    %154 = vmatpush2.msra.mxu0 0.0
    %155 = vmatprep.mubr.f32.mxu0 0.0
    %156 = vmatmul.mubr.f32.gmra.mxu0 %v62
    %v157 = vpop.f32.mrf.mxu0
    %v158 = vadd.f32 %v89, %v157
    %v159 = vpop.f32.mrf.mxu0
    %160 = vmatprep.mubr.f32.mxu0 0.0
    %161 = vmatmul.mubr.f32.gmra.mxu0 %v63
    %v162 = vpop.f32.mrf.mxu0
    %v163 = vadd.f32 %v90, %v162
    %v164 = vpop.f32.mrf.mxu0
    %165 = vdwg.mxu0
    %v166 = vld [vmem:[%s4] sm:$0x1]
    %v168 = vlaneseq
    %v169 = vshrl.u32 %v168, 7
    %v170 = vsub.s32 0, %v169
    %v171 = vrot.slane %v166, %v170
    %v173 = vadd.f32 %v158, %v171
    %v174 = vadd.f32 %v163, %v171
    %175 = vst [vmem:[#allocation8] sm:$0xff] %v173
    %176 = vst [vmem:[#allocation8 + $0x8] sm:$0xff] %v174
    // Predicated region
    $region34: #{tpu_custom_call.1} parent=1 // pred_check
      _
    $region35: #{tpu_custom_call.1} parent=1 // pred_check_branch
      %178 = sbr.rel (0) target = $region37
    $region36: #{tpu_custom_call.1} parent=1 // pred_region
      %s180 = ssub.s32 256, 256
      %181 = vsyncadd [#allocation4], %s180
      %s182 = sshll.u32 [#allocation8], 4
      %s183 = int_to_ptr.vmem [resolvable:$true] %s182
      %188 = dma.vmem_to_hbm [thread:$0]  %s183, 256, %s5, [#allocation4], 128, 128, 8
    $region37: #{tpu_custom_call.1} parent=1 // pred_fallthru
      _
    // Predicated region
    $region38: #{tpu_custom_call.1} parent=1 // pred_check
      _
    $region39: #{tpu_custom_call.1} parent=1 // pred_check_branch
      %190 = sbr.rel (0) target = $region41
    $region40: #{tpu_custom_call.1} parent=1 // pred_region
      %191 = dma.done [#allocation4], 256
    $region41: #{tpu_custom_call.1} parent=1 // pred_fallthru
      _
    %192 = vsyncpa [#allocation3], 1
    %193 = vsyncpa [#allocation6], 1
    %194 = vsyncpa [#allocation4], 1

</llo_original>
